<compile_context>
chip_gen: v7x
topology: tpu7x:2x2x1
jax: 0.10.0
libtpu: 0.0.40
codegen_flags: <defaults>
</compile_context>

<pallas_src>
import functools
import math

import jax
import jax.numpy as jnp
from jax.experimental import pallas as pl
from jax.experimental.pallas import tpu as pltpu


_LANE = 128

# Composed permutations:
#   forward: x (N, C, D1, D2, D3) -> (C, H, b0, b1, b2), where H is the
#            attended axis and (b0, b1, b2) flatten (row-major) into the
#            lane/batch axis — exactly the module's permute + .view order.
#   inverse: kernel output (OP, H, b0, b1, b2) -> (N, OP, D1, D2, D3).
_FWD_PERM = {0: (1, 4, 0, 2, 3), 1: (1, 3, 0, 4, 2), 2: (1, 2, 0, 3, 4)}
_INV_PERM = {0: (2, 0, 3, 4, 1), 1: (2, 0, 4, 1, 3), 2: (2, 0, 1, 3, 4)}


def _round_up(x, m):
    return (x + m - 1) // m * m


# ----------------------------------------------------------------------------
# Pallas kernel: one grid step = TB flattened-batch elements (on lanes),
# full C_in and full H, `groups_per_step` attention groups.
# ----------------------------------------------------------------------------
def _axial_attn_kernel(x_ref, w_ref, bq_ref, bout_ref, o_ref, *,
                       groups_per_step, group_planes, in_planes):
    """
    x_ref    : (C_in, H, TB)               VMEM  input block, batch on lanes
    w_ref    : (2*OP*C_in,)                SMEM  qkv weight, (o, c) row-major;
                                                 bn_qkv + bn_similarity(q-rows)
                                                 + bn_output-scale(v-rows) folded
    bq_ref   : (2*OP,)                     SMEM  folded qkv bias
    bout_ref : (OP,)                       SMEM  bn_output folded bias
    o_ref    : (groups_per_step*gp, H, TB) VMEM  output block, batch on lanes
    """
    C_in = in_planes
    gp = group_planes
    gp2 = gp // 2
    g0 = pl.program_id(1) * groups_per_step

    # Load each input channel once as an (H, TB) lane-dense f32 slab.
    xs = [x_ref[c].astype(jnp.float32) for c in range(C_in)]

    def project(o):
        # qkv channel o: sum_c w[o, c] * x[c] + bias[o].  C_in is tiny, so this
        # is a VPU broadcast-MAC against SMEM scalars.
        # TODO(synk): switch to an MXU GEMM for large in_planes/out_planes.
        acc = xs[0] * w_ref[o * C_in]
        for c in range(1, C_in):
            acc = acc + xs[c] * w_ref[o * C_in + c]
        return acc + bq_ref[o]

    for gg in range(groups_per_step):            # static unroll; gps is small
        g = g0 + gg                              # traced group id
        base = g * (2 * gp)

        q = [project(base + c) for c in range(gp2)]         # bn_similarity folded in
        k = [project(base + gp2 + c) for c in range(gp2)]
        v = [project(base + gp + c) for c in range(gp)]     # bn_output scale folded in

        # qk[i, j, b] = sum_c q_c[i, b] * k_c[j, b]   -> (H, H, TB)
        qk = q[0][:, None, :] * k[0][None, :, :]
        for c in range(1, gp2):
            qk = qk + q[c][:, None, :] * k[c][None, :, :]

        # softmax over j (the sublane axis): XLU max/sum, EUP exp.  The
        # normalization is applied after the e·v reduction, and the divide is
        # exact (approx reciprocal was not accurate enough).
        m = jnp.max(qk, axis=1, keepdims=True)               # (H, 1, TB)
        e = jnp.exp(qk - m)                                   # (H, H, TB)
        inv = 1.0 / jnp.sum(e, axis=1)                        # (H, TB)

        for c in range(gp):
            num = jnp.sum(e * v[c][None, :, :], axis=1)       # (H, TB)
            row_local = gg * gp + c                           # static (output block row)
            row_global = g * gp + c                           # traced (bias index)
            o_ref[row_local] = (num * inv + bout_ref[row_global]).astype(o_ref.dtype)


# ----------------------------------------------------------------------------
# Host-side algebraic folding of the BN affines into the qkv weight/bias.
# ----------------------------------------------------------------------------
def _fold_kernel_params(params, *, groups, group_planes):
    gp = group_planes
    gp2 = gp // 2
    op2 = 2 * groups * gp
    o = jnp.arange(op2)
    g = o // (2 * gp)
    local = o % (2 * gp)
    q_scale = params["s_sim"][g]                                   # q rows
    v_scale = params["s_out"][g * gp + jnp.clip(local - gp, 0, gp - 1)]  # v rows
    row_scale = jnp.where(local < gp2, q_scale,
                          jnp.where(local >= gp, v_scale, 1.0)).astype(jnp.float32)
    w = (params["w_folded"] * row_scale[:, None]).reshape(-1)      # (2*OP*C_in,)
    b = params["b_qkv"] * row_scale                                # (2*OP,)
    return w, b


def _run_pallas(x_chb, params, *, groups, group_planes):
    C_in, H, B = x_chb.shape
    gp = group_planes
    OP = groups * gp
    dtype = x_chb.dtype
    itemsize = jnp.dtype(dtype).itemsize

    def est_bytes(tb, gps):
        # f32 compute slabs (xs, q/k/v, qk/e, m/inv/num) + double-buffered I/O blocks.
        compute = 4 * tb * (C_in * H + gps * (2 * gp * H + 2 * H * H + 4 * H))
        io = 2 * tb * H * (C_in + gps * gp) * itemsize
        return compute + io

    # Lane-dense batch tile: grow while padding waste is zero and the VMEM
    # estimate stays comfortable (big blocks amortize the ~0.35 us per-step
    # overhead; the cap keeps v7x's 64 MiB VMEM safe).
    TB = _LANE
    while TB < 1024:
        cand = TB * 2
        if _round_up(B, cand) > _round_up(B, TB):
            break
        if est_bytes(cand, groups) > 20 * 1024 * 1024:
            break
        TB = cand
    Bpad = _round_up(B, TB)
    nb = Bpad // TB

    # >=2 grid steps (v7x has 2 TensorCores): if the batch axis yields a single
    # block, split groups across a second parallel grid axis.  The x block
    # index is unchanged across that axis, so the input is not re-DMA'd.
    gps = groups if (nb >= 2 or groups == 1) else 1
    ngb = groups // gps

    if Bpad != B:
        # Padded lanes are independent batch elements (softmax is over H, never
        # over lanes); they are sliced off below.
        x_chb = jnp.pad(x_chb, ((0, 0), (0, 0), (0, Bpad - B)))

    w_flat, b_qkv = _fold_kernel_params(params, groups=groups, group_planes=gp)

    kernel = functools.partial(_axial_attn_kernel, groups_per_step=gps,
                               group_planes=gp, in_planes=C_in)

    cparams = dict(dimension_semantics=("parallel", "parallel"))
    eb = est_bytes(TB, gps)
    if eb > 12 * 1024 * 1024:
        cparams["vmem_limit_bytes"] = int(min(40 * 1024 * 1024, 2 * eb))

    smem = pl.BlockSpec(memory_space=pltpu.MemorySpace.SMEM)
    out = pl.pallas_call(
        kernel,
        out_shape=jax.ShapeDtypeStruct((OP, H, Bpad), dtype),
        grid=(nb, ngb),
        in_specs=[
            pl.BlockSpec((C_in, H, TB), lambda i, g: (0, 0, i)),   # x, lane-dense
            smem, smem, smem,                                      # folded params
        ],
        out_specs=pl.BlockSpec((gps * gp, H, TB), lambda i, g: (g, 0, i)),
        compiler_params=pltpu.CompilerParams(**cparams),
    )(x_chb, w_flat, b_qkv, params["b_out"])
    return out[:, :, :B]


# ----------------------------------------------------------------------------
# Parameter construction (deterministic, matches __init__ shapes)
# ----------------------------------------------------------------------------
def init_params(key, in_planes, out_planes, groups, eps=1e-5):
    OP2 = 2 * out_planes
    ks = jax.random.split(key, 13)

    # qkv_transform: Conv1d(in_planes, 2*out_planes, k=1, bias=False);
    # reset_parameters(): weight ~ Normal(0, sqrt(1/in_planes)).
    w_qkv = jax.random.normal(ks[0], (OP2, in_planes), jnp.float32) \
        * math.sqrt(1.0 / in_planes)

    def make_bn(kg, kb, km, kv, n):
        gamma = 1.0 + 0.1 * jax.random.normal(kg, (n,), jnp.float32)
        beta = 0.1 * jax.random.normal(kb, (n,), jnp.float32)
        mean = 0.1 * jax.random.normal(km, (n,), jnp.float32)
        var = 1.0 + 0.1 * jnp.abs(jax.random.normal(kv, (n,), jnp.float32))
        scale = gamma / jnp.sqrt(var + eps)
        bias = beta - scale * mean
        return scale, bias

    s_qkv, b_qkv = make_bn(ks[1], ks[2], ks[3], ks[4], OP2)            # bn_qkv
    s_sim, b_sim = make_bn(ks[5], ks[6], ks[7], ks[8], groups)         # bn_similarity
    s_out, b_out = make_bn(ks[9], ks[10], ks[11], ks[12], out_planes)  # bn_output

    # Fold bn_qkv into the bias-free 1x1 conv.
    return dict(
        w_folded=w_qkv * s_qkv[:, None],   # (2*OP, C_in)
        b_qkv=b_qkv,                       # (2*OP,)
        s_sim=s_sim, b_sim=b_sim,          # (groups,)
        s_out=s_out, b_out=b_out,          # (OP,)
    )


# ----------------------------------------------------------------------------
# Module forward (layout glue in JAX, attention math in the Pallas kernel)
# ----------------------------------------------------------------------------
def axial_attention_wopos(x, params, *, out_planes, groups, width=0,
                          stride=(1, 1, 1)):
    # TODO(synk): AvgPool3d path for stride != (1,1,1) not implemented.
    assert stride == (1, 1, 1)
    group_planes = out_planes // groups
    assert group_planes % 2 == 0, "group_planes must be even (q/k split)"

    wkey = width if width in (0, 1) else 2
    xp = jnp.transpose(x, _FWD_PERM[wkey])        # (C, H, b0, b1, b2)
    C, H = xp.shape[0], xp.shape[1]
    bdims = tuple(xp.shape[2:])
    x_chb = xp.reshape(C, H, -1)                  # (C, H, B), B on lanes

    out_chb = _run_pallas(x_chb, params, groups=groups,
                          group_planes=group_planes)

    out = out_chb.reshape((out_planes, H) + bdims)
    return jnp.transpose(out, _INV_PERM[wkey])    # (N, OP, D1, D2, D3)


# ----------------------------------------------------------------------------
# Pure-JAX reference (module-style permutes/einsums, same folded BN math)
# ----------------------------------------------------------------------------
def reference_forward(x, params, *, out_planes, groups, width=0):
    gp = out_planes // groups
    if width == 0:
        xp = jnp.transpose(x, (0, 2, 3, 1, 4))
    elif width == 1:
        xp = jnp.transpose(x, (0, 4, 2, 1, 3))
    else:
        xp = jnp.transpose(x, (0, 3, 4, 1, 2))
    N, W, L, C, H = xp.shape
    xf = xp.reshape(N * W * L, C, H)
    qkv = jnp.einsum('oc,bch->boh', params["w_folded"], xf) \
        + params["b_qkv"][None, :, None]
    qkv = qkv.reshape(-1, groups, 2 * gp, H)
    q, k, v = qkv[:, :, :gp // 2], qkv[:, :, gp // 2:gp], qkv[:, :, gp:]
    qk = jnp.einsum('bgci,bgcj->bgij', q, k)
    sim = qk * params["s_sim"][None, :, None, None] \
        + params["b_sim"][None, :, None, None]
    p = jax.nn.softmax(sim, axis=-1)
    sv = jnp.einsum('bgij,bgcj->bgci', p, v).reshape(-1, out_planes, H)
    sv = sv * params["s_out"][None, :, None] + params["b_out"][None, :, None]
    out = sv.reshape(N, W, L, out_planes, H)
    if width == 0:
        return jnp.transpose(out, (0, 3, 1, 2, 4))
    elif width == 1:
        return jnp.transpose(out, (0, 3, 2, 4, 1))
    return jnp.transpose(out, (0, 3, 4, 1, 2))


if __name__ == "__main__":
    key = jax.random.PRNGKey(0)
    kx, kp = jax.random.split(key)

    # Small shapes consistent with the module: in_planes=8, out_planes=8,
    # groups=4; NCDHW input with D1=D2=D3=8 so every width attends over H=8.
    in_planes, out_planes, groups = 8, 8, 4
    N, D1, D2, D3 = 2, 8, 8, 8

    x = jax.random.normal(kx, (N, in_planes, D1, D2, D3), dtype=jnp.float32)
    params = init_params(kp, in_planes, out_planes, groups)

    for width in (0, 1, 2):
        out = axial_attention_wopos(x, params, out_planes=out_planes,
                                    groups=groups, width=width)
        out = jax.block_until_ready(out)
        assert out.shape == (N, out_planes, D1, D2, D3), out.shape
        ref = reference_forward(x, params, out_planes=out_planes,
                                groups=groups, width=width)
        err = float(jnp.max(jnp.abs(out - ref)))
        # exact-division softmax: only f32 associativity differences remain
        assert err < 2e-3, (width, err)

    print("KERNEL_OK")
</pallas_src>

<mosaic_0001>
module attributes {stable_mosaic.version = 11 : i64} {
  func.func @_axial_attn_kernel(%arg0: i32, %arg1: i32, %arg2: memref<8x8x128xf32, #tpu.memory_space<vmem>>, %arg3: memref<128xf32, #tpu.memory_space<smem>>, %arg4: memref<16xf32, #tpu.memory_space<smem>>, %arg5: memref<8xf32, #tpu.memory_space<smem>>, %arg6: memref<2x8x128xf32, #tpu.memory_space<vmem>>) attributes {dimension_semantics = [#tpu.dimension_semantics<parallel>, #tpu.dimension_semantics<parallel>], iteration_bounds = array<i64: 1, 4>, scalar_prefetch = 0 : i64, scratch_operands = 0 : i64, tpu.core_type = #tpu.core_type<tc>, window_params = [{transform_indices = @transform_0, window_bounds = array<i64: 8, 8, 128>}, {transform_indices = @transform_1, window_bounds = array<i64: 128>}, {transform_indices = @transform_2, window_bounds = array<i64: 16>}, {transform_indices = @transform_3, window_bounds = array<i64: 8>}, {transform_indices = @transform_4, window_bounds = array<i64: 2, 8, 128>}]} {
    %c1_i32 = arith.constant 1 : i32
    %0 = arith.muli %arg1, %c1_i32 : i32
    %c0 = arith.constant 0 : index
    %c0_0 = arith.constant 0 : index
    %c0_1 = arith.constant 0 : index
    %1 = vector.load %arg2[%c0, %c0_0, %c0_1] : memref<8x8x128xf32, #tpu.memory_space<vmem>>, vector<1x8x128xf32>
    %2 = vector.shape_cast %1 : vector<1x8x128xf32> to vector<8x128xf32>
    %c1 = arith.constant 1 : index
    %c0_2 = arith.constant 0 : index
    %c0_3 = arith.constant 0 : index
    %3 = vector.load %arg2[%c1, %c0_2, %c0_3] : memref<8x8x128xf32, #tpu.memory_space<vmem>>, vector<1x8x128xf32>
    %4 = vector.shape_cast %3 : vector<1x8x128xf32> to vector<8x128xf32>
    %c2 = arith.constant 2 : index
    %c0_4 = arith.constant 0 : index
    %c0_5 = arith.constant 0 : index
    %5 = vector.load %arg2[%c2, %c0_4, %c0_5] : memref<8x8x128xf32, #tpu.memory_space<vmem>>, vector<1x8x128xf32>
    %6 = vector.shape_cast %5 : vector<1x8x128xf32> to vector<8x128xf32>
    %c3 = arith.constant 3 : index
    %c0_6 = arith.constant 0 : index
    %c0_7 = arith.constant 0 : index
    %7 = vector.load %arg2[%c3, %c0_6, %c0_7] : memref<8x8x128xf32, #tpu.memory_space<vmem>>, vector<1x8x128xf32>
    %8 = vector.shape_cast %7 : vector<1x8x128xf32> to vector<8x128xf32>
    %c4 = arith.constant 4 : index
    %c0_8 = arith.constant 0 : index
    %c0_9 = arith.constant 0 : index
    %9 = vector.load %arg2[%c4, %c0_8, %c0_9] : memref<8x8x128xf32, #tpu.memory_space<vmem>>, vector<1x8x128xf32>
    %10 = vector.shape_cast %9 : vector<1x8x128xf32> to vector<8x128xf32>
    %c5 = arith.constant 5 : index
    %c0_10 = arith.constant 0 : index
    %c0_11 = arith.constant 0 : index
    %11 = vector.load %arg2[%c5, %c0_10, %c0_11] : memref<8x8x128xf32, #tpu.memory_space<vmem>>, vector<1x8x128xf32>
    %12 = vector.shape_cast %11 : vector<1x8x128xf32> to vector<8x128xf32>
    %c6 = arith.constant 6 : index
    %c0_12 = arith.constant 0 : index
    %c0_13 = arith.constant 0 : index
    %13 = vector.load %arg2[%c6, %c0_12, %c0_13] : memref<8x8x128xf32, #tpu.memory_space<vmem>>, vector<1x8x128xf32>
    %14 = vector.shape_cast %13 : vector<1x8x128xf32> to vector<8x128xf32>
    %c7 = arith.constant 7 : index
    %c0_14 = arith.constant 0 : index
    %c0_15 = arith.constant 0 : index
    %15 = vector.load %arg2[%c7, %c0_14, %c0_15] : memref<8x8x128xf32, #tpu.memory_space<vmem>>, vector<1x8x128xf32>
    %16 = vector.shape_cast %15 : vector<1x8x128xf32> to vector<8x128xf32>
    %c0_i32 = arith.constant 0 : i32
    %17 = arith.addi %0, %c0_i32 : i32
    %c4_i32 = arith.constant 4 : i32
    %18 = arith.muli %17, %c4_i32 : i32
    %c0_i32_16 = arith.constant 0 : i32
    %19 = arith.addi %18, %c0_i32_16 : i32
    %c8_i32 = arith.constant 8 : i32
    %20 = arith.muli %19, %c8_i32 : i32
    %21 = arith.index_cast %20 : i32 to index
    %22 = memref.load %arg3[%21] : memref<128xf32, #tpu.memory_space<smem>>
    %23 = vector.broadcast %22 : f32 to vector<8x128xf32>
    %24 = arith.mulf %2, %23 : vector<8x128xf32>
    %c8_i32_17 = arith.constant 8 : i32
    %25 = arith.muli %19, %c8_i32_17 : i32
    %c1_i32_18 = arith.constant 1 : i32
    %26 = arith.addi %25, %c1_i32_18 : i32
    %27 = arith.index_cast %26 : i32 to index
    %28 = memref.load %arg3[%27] : memref<128xf32, #tpu.memory_space<smem>>
    %29 = vector.broadcast %28 : f32 to vector<8x128xf32>
    %30 = arith.mulf %4, %29 : vector<8x128xf32>
    %31 = arith.addf %24, %30 : vector<8x128xf32>
    %c8_i32_19 = arith.constant 8 : i32
    %32 = arith.muli %19, %c8_i32_19 : i32
    %c2_i32 = arith.constant 2 : i32
    %33 = arith.addi %32, %c2_i32 : i32
    %34 = arith.index_cast %33 : i32 to index
    %35 = memref.load %arg3[%34] : memref<128xf32, #tpu.memory_space<smem>>
    %36 = vector.broadcast %35 : f32 to vector<8x128xf32>
    %37 = arith.mulf %6, %36 : vector<8x128xf32>
    %38 = arith.addf %31, %37 : vector<8x128xf32>
    %c8_i32_20 = arith.constant 8 : i32
    %39 = arith.muli %19, %c8_i32_20 : i32
    %c3_i32 = arith.constant 3 : i32
    %40 = arith.addi %39, %c3_i32 : i32
    %41 = arith.index_cast %40 : i32 to index
    %42 = memref.load %arg3[%41] : memref<128xf32, #tpu.memory_space<smem>>
    %43 = vector.broadcast %42 : f32 to vector<8x128xf32>
    %44 = arith.mulf %8, %43 : vector<8x128xf32>
    %45 = arith.addf %38, %44 : vector<8x128xf32>
    %c8_i32_21 = arith.constant 8 : i32
    %46 = arith.muli %19, %c8_i32_21 : i32
    %c4_i32_22 = arith.constant 4 : i32
    %47 = arith.addi %46, %c4_i32_22 : i32
    %48 = arith.index_cast %47 : i32 to index
    %49 = memref.load %arg3[%48] : memref<128xf32, #tpu.memory_space<smem>>
    %50 = vector.broadcast %49 : f32 to vector<8x128xf32>
    %51 = arith.mulf %10, %50 : vector<8x128xf32>
    %52 = arith.addf %45, %51 : vector<8x128xf32>
    %c8_i32_23 = arith.constant 8 : i32
    %53 = arith.muli %19, %c8_i32_23 : i32
    %c5_i32 = arith.constant 5 : i32
    %54 = arith.addi %53, %c5_i32 : i32
    %55 = arith.index_cast %54 : i32 to index
    %56 = memref.load %arg3[%55] : memref<128xf32, #tpu.memory_space<smem>>
    %57 = vector.broadcast %56 : f32 to vector<8x128xf32>
    %58 = arith.mulf %12, %57 : vector<8x128xf32>
    %59 = arith.addf %52, %58 : vector<8x128xf32>
    %c8_i32_24 = arith.constant 8 : i32
    %60 = arith.muli %19, %c8_i32_24 : i32
    %c6_i32 = arith.constant 6 : i32
    %61 = arith.addi %60, %c6_i32 : i32
    %62 = arith.index_cast %61 : i32 to index
    %63 = memref.load %arg3[%62] : memref<128xf32, #tpu.memory_space<smem>>
    %64 = vector.broadcast %63 : f32 to vector<8x128xf32>
    %65 = arith.mulf %14, %64 : vector<8x128xf32>
    %66 = arith.addf %59, %65 : vector<8x128xf32>
    %c8_i32_25 = arith.constant 8 : i32
    %67 = arith.muli %19, %c8_i32_25 : i32
    %c7_i32 = arith.constant 7 : i32
    %68 = arith.addi %67, %c7_i32 : i32
    %69 = arith.index_cast %68 : i32 to index
    %70 = memref.load %arg3[%69] : memref<128xf32, #tpu.memory_space<smem>>
    %71 = vector.broadcast %70 : f32 to vector<8x128xf32>
    %72 = arith.mulf %16, %71 : vector<8x128xf32>
    %73 = arith.addf %66, %72 : vector<8x128xf32>
    %74 = arith.index_cast %19 : i32 to index
    %75 = memref.load %arg4[%74] : memref<16xf32, #tpu.memory_space<smem>>
    %76 = vector.broadcast %75 : f32 to vector<8x128xf32>
    %77 = arith.addf %73, %76 : vector<8x128xf32>
    %c1_i32_26 = arith.constant 1 : i32
    %78 = arith.addi %18, %c1_i32_26 : i32
    %c0_i32_27 = arith.constant 0 : i32
    %79 = arith.addi %78, %c0_i32_27 : i32
    %c8_i32_28 = arith.constant 8 : i32
    %80 = arith.muli %79, %c8_i32_28 : i32
    %81 = arith.index_cast %80 : i32 to index
    %82 = memref.load %arg3[%81] : memref<128xf32, #tpu.memory_space<smem>>
    %83 = vector.broadcast %82 : f32 to vector<8x128xf32>
    %84 = arith.mulf %2, %83 : vector<8x128xf32>
    %c8_i32_29 = arith.constant 8 : i32
    %85 = arith.muli %79, %c8_i32_29 : i32
    %c1_i32_30 = arith.constant 1 : i32
    %86 = arith.addi %85, %c1_i32_30 : i32
    %87 = arith.index_cast %86 : i32 to index
    %88 = memref.load %arg3[%87] : memref<128xf32, #tpu.memory_space<smem>>
    %89 = vector.broadcast %88 : f32 to vector<8x128xf32>
    %90 = arith.mulf %4, %89 : vector<8x128xf32>
    %91 = arith.addf %84, %90 : vector<8x128xf32>
    %c8_i32_31 = arith.constant 8 : i32
    %92 = arith.muli %79, %c8_i32_31 : i32
    %c2_i32_32 = arith.constant 2 : i32
    %93 = arith.addi %92, %c2_i32_32 : i32
    %94 = arith.index_cast %93 : i32 to index
    %95 = memref.load %arg3[%94] : memref<128xf32, #tpu.memory_space<smem>>
    %96 = vector.broadcast %95 : f32 to vector<8x128xf32>
    %97 = arith.mulf %6, %96 : vector<8x128xf32>
    %98 = arith.addf %91, %97 : vector<8x128xf32>
    %c8_i32_33 = arith.constant 8 : i32
    %99 = arith.muli %79, %c8_i32_33 : i32
    %c3_i32_34 = arith.constant 3 : i32
    %100 = arith.addi %99, %c3_i32_34 : i32
    %101 = arith.index_cast %100 : i32 to index
    %102 = memref.load %arg3[%101] : memref<128xf32, #tpu.memory_space<smem>>
    %103 = vector.broadcast %102 : f32 to vector<8x128xf32>
    %104 = arith.mulf %8, %103 : vector<8x128xf32>
    %105 = arith.addf %98, %104 : vector<8x128xf32>
    %c8_i32_35 = arith.constant 8 : i32
    %106 = arith.muli %79, %c8_i32_35 : i32
    %c4_i32_36 = arith.constant 4 : i32
    %107 = arith.addi %106, %c4_i32_36 : i32
    %108 = arith.index_cast %107 : i32 to index
    %109 = memref.load %arg3[%108] : memref<128xf32, #tpu.memory_space<smem>>
    %110 = vector.broadcast %109 : f32 to vector<8x128xf32>
    %111 = arith.mulf %10, %110 : vector<8x128xf32>
    %112 = arith.addf %105, %111 : vector<8x128xf32>
    %c8_i32_37 = arith.constant 8 : i32
    %113 = arith.muli %79, %c8_i32_37 : i32
    %c5_i32_38 = arith.constant 5 : i32
    %114 = arith.addi %113, %c5_i32_38 : i32
    %115 = arith.index_cast %114 : i32 to index
    %116 = memref.load %arg3[%115] : memref<128xf32, #tpu.memory_space<smem>>
    %117 = vector.broadcast %116 : f32 to vector<8x128xf32>
    %118 = arith.mulf %12, %117 : vector<8x128xf32>
    %119 = arith.addf %112, %118 : vector<8x128xf32>
    %c8_i32_39 = arith.constant 8 : i32
    %120 = arith.muli %79, %c8_i32_39 : i32
    %c6_i32_40 = arith.constant 6 : i32
    %121 = arith.addi %120, %c6_i32_40 : i32
    %122 = arith.index_cast %121 : i32 to index
    %123 = memref.load %arg3[%122] : memref<128xf32, #tpu.memory_space<smem>>
    %124 = vector.broadcast %123 : f32 to vector<8x128xf32>
    %125 = arith.mulf %14, %124 : vector<8x128xf32>
    %126 = arith.addf %119, %125 : vector<8x128xf32>
    %c8_i32_41 = arith.constant 8 : i32
    %127 = arith.muli %79, %c8_i32_41 : i32
    %c7_i32_42 = arith.constant 7 : i32
    %128 = arith.addi %127, %c7_i32_42 : i32
    %129 = arith.index_cast %128 : i32 to index
    %130 = memref.load %arg3[%129] : memref<128xf32, #tpu.memory_space<smem>>
    %131 = vector.broadcast %130 : f32 to vector<8x128xf32>
    %132 = arith.mulf %16, %131 : vector<8x128xf32>
    %133 = arith.addf %126, %132 : vector<8x128xf32>
    %134 = arith.index_cast %79 : i32 to index
    %135 = memref.load %arg4[%134] : memref<16xf32, #tpu.memory_space<smem>>
    %136 = vector.broadcast %135 : f32 to vector<8x128xf32>
    %137 = arith.addf %133, %136 : vector<8x128xf32>
    %c2_i32_43 = arith.constant 2 : i32
    %138 = arith.addi %18, %c2_i32_43 : i32
    %c0_i32_44 = arith.constant 0 : i32
    %139 = arith.addi %138, %c0_i32_44 : i32
    %c8_i32_45 = arith.constant 8 : i32
    %140 = arith.muli %139, %c8_i32_45 : i32
    %141 = arith.index_cast %140 : i32 to index
    %142 = memref.load %arg3[%141] : memref<128xf32, #tpu.memory_space<smem>>
    %143 = vector.broadcast %142 : f32 to vector<8x128xf32>
    %144 = arith.mulf %2, %143 : vector<8x128xf32>
    %c8_i32_46 = arith.constant 8 : i32
    %145 = arith.muli %139, %c8_i32_46 : i32
    %c1_i32_47 = arith.constant 1 : i32
    %146 = arith.addi %145, %c1_i32_47 : i32
    %147 = arith.index_cast %146 : i32 to index
    %148 = memref.load %arg3[%147] : memref<128xf32, #tpu.memory_space<smem>>
    %149 = vector.broadcast %148 : f32 to vector<8x128xf32>
    %150 = arith.mulf %4, %149 : vector<8x128xf32>
    %151 = arith.addf %144, %150 : vector<8x128xf32>
    %c8_i32_48 = arith.constant 8 : i32
    %152 = arith.muli %139, %c8_i32_48 : i32
    %c2_i32_49 = arith.constant 2 : i32
    %153 = arith.addi %152, %c2_i32_49 : i32
    %154 = arith.index_cast %153 : i32 to index
    %155 = memref.load %arg3[%154] : memref<128xf32, #tpu.memory_space<smem>>
    %156 = vector.broadcast %155 : f32 to vector<8x128xf32>
    %157 = arith.mulf %6, %156 : vector<8x128xf32>
    %158 = arith.addf %151, %157 : vector<8x128xf32>
    %c8_i32_50 = arith.constant 8 : i32
    %159 = arith.muli %139, %c8_i32_50 : i32
    %c3_i32_51 = arith.constant 3 : i32
    %160 = arith.addi %159, %c3_i32_51 : i32
    %161 = arith.index_cast %160 : i32 to index
    %162 = memref.load %arg3[%161] : memref<128xf32, #tpu.memory_space<smem>>
    %163 = vector.broadcast %162 : f32 to vector<8x128xf32>
    %164 = arith.mulf %8, %163 : vector<8x128xf32>
    %165 = arith.addf %158, %164 : vector<8x128xf32>
    %c8_i32_52 = arith.constant 8 : i32
    %166 = arith.muli %139, %c8_i32_52 : i32
    %c4_i32_53 = arith.constant 4 : i32
    %167 = arith.addi %166, %c4_i32_53 : i32
    %168 = arith.index_cast %167 : i32 to index
    %169 = memref.load %arg3[%168] : memref<128xf32, #tpu.memory_space<smem>>
    %170 = vector.broadcast %169 : f32 to vector<8x128xf32>
    %171 = arith.mulf %10, %170 : vector<8x128xf32>
    %172 = arith.addf %165, %171 : vector<8x128xf32>
    %c8_i32_54 = arith.constant 8 : i32
    %173 = arith.muli %139, %c8_i32_54 : i32
    %c5_i32_55 = arith.constant 5 : i32
    %174 = arith.addi %173, %c5_i32_55 : i32
    %175 = arith.index_cast %174 : i32 to index
    %176 = memref.load %arg3[%175] : memref<128xf32, #tpu.memory_space<smem>>
    %177 = vector.broadcast %176 : f32 to vector<8x128xf32>
    %178 = arith.mulf %12, %177 : vector<8x128xf32>
    %179 = arith.addf %172, %178 : vector<8x128xf32>
    %c8_i32_56 = arith.constant 8 : i32
    %180 = arith.muli %139, %c8_i32_56 : i32
    %c6_i32_57 = arith.constant 6 : i32
    %181 = arith.addi %180, %c6_i32_57 : i32
    %182 = arith.index_cast %181 : i32 to index
    %183 = memref.load %arg3[%182] : memref<128xf32, #tpu.memory_space<smem>>
    %184 = vector.broadcast %183 : f32 to vector<8x128xf32>
    %185 = arith.mulf %14, %184 : vector<8x128xf32>
    %186 = arith.addf %179, %185 : vector<8x128xf32>
    %c8_i32_58 = arith.constant 8 : i32
    %187 = arith.muli %139, %c8_i32_58 : i32
    %c7_i32_59 = arith.constant 7 : i32
    %188 = arith.addi %187, %c7_i32_59 : i32
    %189 = arith.index_cast %188 : i32 to index
    %190 = memref.load %arg3[%189] : memref<128xf32, #tpu.memory_space<smem>>
    %191 = vector.broadcast %190 : f32 to vector<8x128xf32>
    %192 = arith.mulf %16, %191 : vector<8x128xf32>
    %193 = arith.addf %186, %192 : vector<8x128xf32>
    %194 = arith.index_cast %139 : i32 to index
    %195 = memref.load %arg4[%194] : memref<16xf32, #tpu.memory_space<smem>>
    %196 = vector.broadcast %195 : f32 to vector<8x128xf32>
    %197 = arith.addf %193, %196 : vector<8x128xf32>
    %c2_i32_60 = arith.constant 2 : i32
    %198 = arith.addi %18, %c2_i32_60 : i32
    %c1_i32_61 = arith.constant 1 : i32
    %199 = arith.addi %198, %c1_i32_61 : i32
    %c8_i32_62 = arith.constant 8 : i32
    %200 = arith.muli %199, %c8_i32_62 : i32
    %201 = arith.index_cast %200 : i32 to index
    %202 = memref.load %arg3[%201] : memref<128xf32, #tpu.memory_space<smem>>
    %203 = vector.broadcast %202 : f32 to vector<8x128xf32>
    %204 = arith.mulf %2, %203 : vector<8x128xf32>
    %c8_i32_63 = arith.constant 8 : i32
    %205 = arith.muli %199, %c8_i32_63 : i32
    %c1_i32_64 = arith.constant 1 : i32
    %206 = arith.addi %205, %c1_i32_64 : i32
    %207 = arith.index_cast %206 : i32 to index
    %208 = memref.load %arg3[%207] : memref<128xf32, #tpu.memory_space<smem>>
    %209 = vector.broadcast %208 : f32 to vector<8x128xf32>
    %210 = arith.mulf %4, %209 : vector<8x128xf32>
    %211 = arith.addf %204, %210 : vector<8x128xf32>
    %c8_i32_65 = arith.constant 8 : i32
    %212 = arith.muli %199, %c8_i32_65 : i32
    %c2_i32_66 = arith.constant 2 : i32
    %213 = arith.addi %212, %c2_i32_66 : i32
    %214 = arith.index_cast %213 : i32 to index
    %215 = memref.load %arg3[%214] : memref<128xf32, #tpu.memory_space<smem>>
    %216 = vector.broadcast %215 : f32 to vector<8x128xf32>
    %217 = arith.mulf %6, %216 : vector<8x128xf32>
    %218 = arith.addf %211, %217 : vector<8x128xf32>
    %c8_i32_67 = arith.constant 8 : i32
    %219 = arith.muli %199, %c8_i32_67 : i32
    %c3_i32_68 = arith.constant 3 : i32
    %220 = arith.addi %219, %c3_i32_68 : i32
    %221 = arith.index_cast %220 : i32 to index
    %222 = memref.load %arg3[%221] : memref<128xf32, #tpu.memory_space<smem>>
    %223 = vector.broadcast %222 : f32 to vector<8x128xf32>
    %224 = arith.mulf %8, %223 : vector<8x128xf32>
    %225 = arith.addf %218, %224 : vector<8x128xf32>
    %c8_i32_69 = arith.constant 8 : i32
    %226 = arith.muli %199, %c8_i32_69 : i32
    %c4_i32_70 = arith.constant 4 : i32
    %227 = arith.addi %226, %c4_i32_70 : i32
    %228 = arith.index_cast %227 : i32 to index
    %229 = memref.load %arg3[%228] : memref<128xf32, #tpu.memory_space<smem>>
    %230 = vector.broadcast %229 : f32 to vector<8x128xf32>
    %231 = arith.mulf %10, %230 : vector<8x128xf32>
    %232 = arith.addf %225, %231 : vector<8x128xf32>
    %c8_i32_71 = arith.constant 8 : i32
    %233 = arith.muli %199, %c8_i32_71 : i32
    %c5_i32_72 = arith.constant 5 : i32
    %234 = arith.addi %233, %c5_i32_72 : i32
    %235 = arith.index_cast %234 : i32 to index
    %236 = memref.load %arg3[%235] : memref<128xf32, #tpu.memory_space<smem>>
    %237 = vector.broadcast %236 : f32 to vector<8x128xf32>
    %238 = arith.mulf %12, %237 : vector<8x128xf32>
    %239 = arith.addf %232, %238 : vector<8x128xf32>
    %c8_i32_73 = arith.constant 8 : i32
    %240 = arith.muli %199, %c8_i32_73 : i32
    %c6_i32_74 = arith.constant 6 : i32
    %241 = arith.addi %240, %c6_i32_74 : i32
    %242 = arith.index_cast %241 : i32 to index
    %243 = memref.load %arg3[%242] : memref<128xf32, #tpu.memory_space<smem>>
    %244 = vector.broadcast %243 : f32 to vector<8x128xf32>
    %245 = arith.mulf %14, %244 : vector<8x128xf32>
    %246 = arith.addf %239, %245 : vector<8x128xf32>
    %c8_i32_75 = arith.constant 8 : i32
    %247 = arith.muli %199, %c8_i32_75 : i32
    %c7_i32_76 = arith.constant 7 : i32
    %248 = arith.addi %247, %c7_i32_76 : i32
    %249 = arith.index_cast %248 : i32 to index
    %250 = memref.load %arg3[%249] : memref<128xf32, #tpu.memory_space<smem>>
    %251 = vector.broadcast %250 : f32 to vector<8x128xf32>
    %252 = arith.mulf %16, %251 : vector<8x128xf32>
    %253 = arith.addf %246, %252 : vector<8x128xf32>
    %254 = arith.index_cast %199 : i32 to index
    %255 = memref.load %arg4[%254] : memref<16xf32, #tpu.memory_space<smem>>
    %256 = vector.broadcast %255 : f32 to vector<8x128xf32>
    %257 = arith.addf %253, %256 : vector<8x128xf32>
    %258 = vector.shape_cast %77 : vector<8x128xf32> to vector<8x1x128xf32>
    %259 = vector.shape_cast %137 : vector<8x128xf32> to vector<1x8x128xf32>
    %260 = vector.broadcast %258 : vector<8x1x128xf32> to vector<8x8x128xf32>
    %261 = vector.broadcast %259 : vector<1x8x128xf32> to vector<8x8x128xf32>
    %262 = arith.mulf %260, %261 : vector<8x8x128xf32>
    %cst = arith.constant dense<0xFF800000> : vector<8x128xf32>
    %263 = vector.multi_reduction <maximumf>, %262, %cst [1] : vector<8x8x128xf32> to vector<8x128xf32>
    %264 = vector.shape_cast %263 : vector<8x128xf32> to vector<8x1x128xf32>
    %265 = vector.broadcast %264 : vector<8x1x128xf32> to vector<8x8x128xf32>
    %266 = arith.subf %262, %265 : vector<8x8x128xf32>
    %267 = math.exp %266 : vector<8x8x128xf32>
    %cst_77 = arith.constant dense<0.000000e+00> : vector<8x128xf32>
    %268 = vector.multi_reduction <add>, %267, %cst_77 [1] : vector<8x8x128xf32> to vector<8x128xf32>
    %cst_78 = arith.constant 1.000000e+00 : f32
    %269 = vector.broadcast %cst_78 : f32 to vector<8x128xf32>
    %270 = arith.divf %269, %268 : vector<8x128xf32>
    %271 = vector.shape_cast %197 : vector<8x128xf32> to vector<1x8x128xf32>
    %272 = vector.broadcast %271 : vector<1x8x128xf32> to vector<8x8x128xf32>
    %273 = arith.mulf %267, %272 : vector<8x8x128xf32>
    %cst_79 = arith.constant dense<0.000000e+00> : vector<8x128xf32>
    %274 = vector.multi_reduction <add>, %273, %cst_79 [1] : vector<8x8x128xf32> to vector<8x128xf32>
    %c2_i32_80 = arith.constant 2 : i32
    %275 = arith.muli %17, %c2_i32_80 : i32
    %c0_i32_81 = arith.constant 0 : i32
    %276 = arith.addi %275, %c0_i32_81 : i32
    %277 = arith.mulf %274, %270 : vector<8x128xf32>
    %278 = arith.index_cast %276 : i32 to index
    %279 = memref.load %arg5[%278] : memref<8xf32, #tpu.memory_space<smem>>
    %280 = vector.broadcast %279 : f32 to vector<8x128xf32>
    %281 = arith.addf %277, %280 : vector<8x128xf32>
    %c0_82 = arith.constant 0 : index
    %c0_83 = arith.constant 0 : index
    %c0_84 = arith.constant 0 : index
    %282 = vector.load %arg6[%c0_82, %c0_83, %c0_84] : memref<2x8x128xf32, #tpu.memory_space<vmem>>, vector<1x8x128xf32>
    %283 = vector.shape_cast %282 : vector<1x8x128xf32> to vector<8x128xf32>
    %284 = vector.shape_cast %281 : vector<8x128xf32> to vector<1x8x128xf32>
    tpu.vector_store %arg6[%c0_82, %c0_83, %c0_84], %284 {strides = array<i32>} : memref<2x8x128xf32, #tpu.memory_space<vmem>>, vector<1x8x128xf32>,
    %285 = vector.shape_cast %257 : vector<8x128xf32> to vector<1x8x128xf32>
    %286 = vector.broadcast %285 : vector<1x8x128xf32> to vector<8x8x128xf32>
    %287 = arith.mulf %267, %286 : vector<8x8x128xf32>
    %cst_85 = arith.constant dense<0.000000e+00> : vector<8x128xf32>
    %288 = vector.multi_reduction <add>, %287, %cst_85 [1] : vector<8x8x128xf32> to vector<8x128xf32>
    %c2_i32_86 = arith.constant 2 : i32
    %289 = arith.muli %17, %c2_i32_86 : i32
    %c1_i32_87 = arith.constant 1 : i32
    %290 = arith.addi %289, %c1_i32_87 : i32
    %291 = arith.mulf %288, %270 : vector<8x128xf32>
    %292 = arith.index_cast %290 : i32 to index
    %293 = memref.load %arg5[%292] : memref<8xf32, #tpu.memory_space<smem>>
    %294 = vector.broadcast %293 : f32 to vector<8x128xf32>
    %295 = arith.addf %291, %294 : vector<8x128xf32>
    %c1_88 = arith.constant 1 : index
    %c0_89 = arith.constant 0 : index
    %c0_90 = arith.constant 0 : index
    %296 = vector.load %arg6[%c1_88, %c0_89, %c0_90] : memref<2x8x128xf32, #tpu.memory_space<vmem>>, vector<1x8x128xf32>
    %297 = vector.shape_cast %296 : vector<1x8x128xf32> to vector<8x128xf32>
    %298 = vector.shape_cast %295 : vector<8x128xf32> to vector<1x8x128xf32>
    tpu.vector_store %arg6[%c1_88, %c0_89, %c0_90], %298 {strides = array<i32>} : memref<2x8x128xf32, #tpu.memory_space<vmem>>, vector<1x8x128xf32>,
    return
  }
  func.func @transform_0(%arg0: i32, %arg1: i32) -> (i32, i32, i32) {
    %c0_i32 = arith.constant 0 : i32
    %c0_i32_0 = arith.constant 0 : i32
    %c0_i32_1 = arith.constant 0 : i32
    return %c0_i32, %c0_i32_0, %arg0 : i32, i32, i32
  }
  func.func @transform_1(%arg0: i32, %arg1: i32) -> i32 {
    %c0_i32 = arith.constant 0 : i32
    %c0_i32_0 = arith.constant 0 : i32
    return %c0_i32 : i32
  }
  func.func @transform_2(%arg0: i32, %arg1: i32) -> i32 {
    %c0_i32 = arith.constant 0 : i32
    %c0_i32_0 = arith.constant 0 : i32
    return %c0_i32 : i32
  }
  func.func @transform_3(%arg0: i32, %arg1: i32) -> i32 {
    %c0_i32 = arith.constant 0 : i32
    %c0_i32_0 = arith.constant 0 : i32
    return %c0_i32 : i32
  }
  func.func @transform_4(%arg0: i32, %arg1: i32) -> (i32, i32, i32) {
    %c0_i32 = arith.constant 0 : i32
    %c0_i32_0 = arith.constant 0 : i32
    return %arg1, %c0_i32, %arg0 : i32, i32, i32
  }
}

</mosaic_0001>

<llo_original>
// kernel: tpu_custom_call.1
$region0: #{tpu_custom_call.1}
  #allocation0 [shape = 'u32[]', space=smem, size = 0x4, offset = 0x4, fixed_abs, tag = 'smem constant byte address 0x4 - core index']
  #allocation1 [shape = 'u32[144,128]{1,0:T(1,128)}', space=vmem, size = 0x12000, scoped, tag = 'internal scratch']
  %s0 = inlined_call_operand.hbm [shape: f32[8,8,128], index: 0, kind: input, shape index: {}]
  %s1 = inlined_call_operand.vmem [shape: f32[128], index: 1, kind: input, shape index: {}]
  %s2 = inlined_call_operand.vmem [shape: f32[16], index: 2, kind: input, shape index: {}]
  %s3 = inlined_call_operand.vmem [shape: f32[8], index: 3, kind: input, shape index: {}]
  %s4 = inlined_call_operand.hbm [shape: f32[8,8,128], index: 4, kind: output, shape index: {}]
  %s5 = sld [smem:[#allocation0]]
  $region65: #{tpu_custom_call.1} parent=0
    _
  %s7 = ssub.s32 1, %s5
  %s8 = scalar_select 0, %s7, %s5
  $region1: #{tpu_custom_call.1} parent=0
    #allocation2 [shape = 'u8[32768]{0}', space=vmem, size = 0x8000, scoped, tag = 'input window, operand 0, single buffered']
    #allocation3 [shape = 's32[2]{0}', space=sflag, size = 0x8, scoped, tag = 'scoped memory for tpu_custom_call.1']
    #allocation4 [shape = 's32[2]{0}', space=sflag, size = 0x8, scoped, tag = 'scoped memory for tpu_custom_call.1']
    #allocation5 [shape = 's32[2]{0}', space=sflag, size = 0x8, scoped, tag = 'scoped memory for tpu_custom_call.1']
    #allocation6 [shape = 'u8[512]{0}', space=smem, size = 0x200, scoped, tag = 'input window, operand 1, single buffered']
    #allocation7 [shape = 'u8[512]{0}', space=smem, size = 0x200, scoped, tag = 'input window, operand 2, single buffered']
    #allocation8 [shape = 's32[1]{0}', space=sflag, size = 0x4, scoped, tag = 'scoped memory for tpu_custom_call.1']
    #allocation9 [shape = 'u8[512]{0}', space=smem, size = 0x200, scoped, tag = 'input window, operand 3, single buffered']
    #allocation10 [shape = 'u8[16384]{0}', space=vmem, size = 0x4000, scoped, tag = 'output window, operand 0']
    %9 = vsyncpa [#allocation3], 0
    %10 = vsyncpa [#allocation5], 0
    %11 = vsyncpa [#allocation8], 0
    %12 = vsyncpa [#allocation4], 0
    %s13 = scalar_lea.sflag [#allocation4], 1
    %14 = vsyncpa %s13, 0
    loop: start=0, step=1, limit=6
    $region2: #{tpu_custom_call.1} parent=1 // loop_pre_header
      _
    $region3: #{tpu_custom_call.1} parent=1 // loop_header
      %s16 = sphi 0, %s20
      %p17 = scmp.ge.s32.totalorder %s16, 6
      %s23 = sphi 0, %s35
      %s24 = sphi 0, %s31
      %s25 = sphi 0, %s23
      %s26 = sphi 0, %s24
      %s27 = sphi 0, %s25
      %s28 = sphi 0, %s26
      %s38 = sphi 0, %s40
      %s41 = sphi 0, %s38
      %s42 = sphi 0, %s41
      %s58 = sphi 0, %s42
      %s62 = sphi 0, %s62
      %s64 = sphi 0, %s62
      %s65 = sphi 0, %s64
      %s79 = sphi 0, %s65
      %s83 = sphi 0, %s83
      %s85 = sphi 0, %s83
      %s86 = sphi 0, %s85
      %s100 = sphi 0, %s86
      %s104 = sphi 0, %s104
      %s106 = sphi 0, %s104
      %s107 = sphi 0, %s106
      %s121 = sphi 0, %s107
      %s129 = sphi 0, %s131
      %s132 = sphi 0, %s129
      %s133 = sphi 0, %s132
      %s149 = sphi 0, %s133
    $region4: #{tpu_custom_call.1} parent=1 // loop_header_branch
      %19 = sbr.rel (%p17) target = $region8
    $region5: #{tpu_custom_call.1} parent=1 // loop_body
      %s21 = ssub.s32 %s16, 1
      %s22 = ssub.s32 %s16, 2
      %s29 = sadd.s32 1, %s24
      %p30 = scmp.ge.s32.totalorder %s29, 4
      %s31 = scalar_select %p30, 0, %s29
      %s32 = sadd.s32 1, %s23
      %s33 = scalar_select %p30, %s32, %s23
      %p34 = scmp.ge.s32.totalorder %s33, 1
      %s35 = scalar_select %p34, 0, %s33
      %s36 = ssub.s32 %s23, %s35
      %p37 = scmp.eq.s32.totalorder %s36, 0
      %s39 = sadd.s32 %s38, 1
      %s40 = scalar_select %p37, %s38, %s39
      %p43 = pneg %p37
      %p44 = scmp.eq.s32.totalorder %s16, 3
      %p45 = por %p43, %p44
      %p46 = scmp.ne.s32.totalorder %s38, %s41
      %p47 = scmp.eq.s32.totalorder %s16, 0
      %p48 = por %p46, %p47
      %p49 = scmp.ne.s32.totalorder %s38, %s41
      %p50 = scmp.eq.s32.totalorder %s21, 3
      %p51 = por %p49, %p50
      %p52 = scmp.ne.s32.totalorder %s41, %s42
      %p53 = scmp.eq.s32.totalorder %s21, 0
      %p54 = por %p52, %p53
      %p55 = scmp.ne.s32.totalorder %s41, %s42
      %p56 = scmp.eq.s32.totalorder %s22, 3
      %p57 = por %p55, %p56
      %p59 = scmp.ne.s32.totalorder %s42, %s58
      %p60 = scmp.eq.s32.totalorder %s22, 0
      %p61 = por %p59, %p60
      %s63 = sadd.s32 %s62, 1
      %p66 = scmp.eq.s32.totalorder %s16, 3
      %p67 = scmp.ne.s32.totalorder %s62, %s64
      %p68 = scmp.eq.s32.totalorder %s16, 0
      %p69 = por %p67, %p68
      %p70 = scmp.ne.s32.totalorder %s62, %s64
      %p71 = scmp.eq.s32.totalorder %s21, 3
      %p72 = por %p70, %p71
      %p73 = scmp.ne.s32.totalorder %s64, %s65
      %p74 = scmp.eq.s32.totalorder %s21, 0
      %p75 = por %p73, %p74
      %p76 = scmp.ne.s32.totalorder %s64, %s65
      %p77 = scmp.eq.s32.totalorder %s22, 3
      %p78 = por %p76, %p77
      %p80 = scmp.ne.s32.totalorder %s65, %s79
      %p81 = scmp.eq.s32.totalorder %s22, 0
      %p82 = por %p80, %p81
      %s84 = sadd.s32 %s83, 1
      %p87 = scmp.eq.s32.totalorder %s16, 3
      %p88 = scmp.ne.s32.totalorder %s83, %s85
      %p89 = scmp.eq.s32.totalorder %s16, 0
      %p90 = por %p88, %p89
      %p91 = scmp.ne.s32.totalorder %s83, %s85
      %p92 = scmp.eq.s32.totalorder %s21, 3
      %p93 = por %p91, %p92
      %p94 = scmp.ne.s32.totalorder %s85, %s86
      %p95 = scmp.eq.s32.totalorder %s21, 0
      %p96 = por %p94, %p95
      %p97 = scmp.ne.s32.totalorder %s85, %s86
      %p98 = scmp.eq.s32.totalorder %s22, 3
      %p99 = por %p97, %p98
      %p101 = scmp.ne.s32.totalorder %s86, %s100
      %p102 = scmp.eq.s32.totalorder %s22, 0
      %p103 = por %p101, %p102
      %s105 = sadd.s32 %s104, 1
      %p108 = scmp.eq.s32.totalorder %s16, 3
      %p109 = scmp.ne.s32.totalorder %s104, %s106
      %p110 = scmp.eq.s32.totalorder %s16, 0
      %p111 = por %p109, %p110
      %p112 = scmp.ne.s32.totalorder %s104, %s106
      %p113 = scmp.eq.s32.totalorder %s21, 3
      %p114 = por %p112, %p113
      %p115 = scmp.ne.s32.totalorder %s106, %s107
      %p116 = scmp.eq.s32.totalorder %s21, 0
      %p117 = por %p115, %p116
      %p118 = scmp.ne.s32.totalorder %s106, %s107
      %p119 = scmp.eq.s32.totalorder %s22, 3
      %p120 = por %p118, %p119
      %p122 = scmp.ne.s32.totalorder %s107, %s121
      %p123 = scmp.eq.s32.totalorder %s22, 0
      %p124 = por %p122, %p123
      %s125 = ssub.s32 %s24, %s31
      %s126 = ssub.s32 %s23, %s35
      %s127 = sor.u32 %s125, %s126
      %p128 = scmp.eq.s32.totalorder %s127, 0
      %s130 = sadd.s32 %s129, 1
      %s131 = scalar_select %p128, %s129, %s130
      %p134 = pneg %p128
      %p135 = scmp.eq.s32.totalorder %s16, 3
      %p136 = por %p134, %p135
      %p137 = scmp.ne.s32.totalorder %s129, %s132
      %p138 = scmp.eq.s32.totalorder %s16, 0
      %p139 = por %p137, %p138
      %p140 = scmp.ne.s32.totalorder %s129, %s132
      %p141 = scmp.eq.s32.totalorder %s21, 3
      %p142 = por %p140, %p141
      %p143 = scmp.ne.s32.totalorder %s132, %s133
      %p144 = scmp.eq.s32.totalorder %s21, 0
      %p145 = por %p143, %p144
      %p146 = scmp.ne.s32.totalorder %s132, %s133
      %p147 = scmp.eq.s32.totalorder %s22, 3
      %p148 = por %p146, %p147
      %p150 = scmp.ne.s32.totalorder %s133, %s149
      %p151 = scmp.eq.s32.totalorder %s22, 0
      %p152 = por %p150, %p151
      %p153 = scmp.le.s32.totalorder 1, %s16
      %p154 = scmp.lt.s32.totalorder %s16, 5
      %p155 = pnand %p153, %p154
      %p156 = pneg %p155
      // Predicated region
      $region9: #{tpu_custom_call.1} parent=5 // pred_check
        _
      $region10: #{tpu_custom_call.1} parent=5 // pred_check_branch
        %158 = sbr.rel (%p155) target = $region12
      $region11: #{tpu_custom_call.1} parent=5 // pred_region
        %s159 = ssub.s32 %s16, 1
        // Predicated region
        $region13: #{tpu_custom_call.1} parent=11 // pred_check
          %p160 = pneg %p54
        $region14: #{tpu_custom_call.1} parent=11 // pred_check_branch
          %162 = sbr.rel (%p160) target = $region16
        $region15: #{tpu_custom_call.1} parent=11 // pred_region
          %s164 = ssub.s32 1024, 1024
          %165 = vsyncadd [#allocation3], %s164
          %s166 = smul.addr %s25, 128
          %s167 = scalar_lea.hbm %s0, %s166
          %s168 = sshll.u32 [#allocation2], 4
          %s169 = int_to_ptr.vmem [resolvable:$true] %s168
          %174 = dma.hbm_to_vmem [thread:$0]  %s167, 1024, %s169, [#allocation3], 128, 128, 8
        $region16: #{tpu_custom_call.1} parent=11 // pred_fallthru
          _
        // Predicated region
        $region17: #{tpu_custom_call.1} parent=11 // pred_check
          %p175 = pneg %p75
        $region18: #{tpu_custom_call.1} parent=11 // pred_check_branch
          %177 = sbr.rel (%p175) target = $region20
        $region19: #{tpu_custom_call.1} parent=11 // pred_region
          %s179 = ssub.s32 16, 16
          %180 = vsyncadd [#allocation5], %s179
          %s182 = sshll.u32 %s1, 4
          %s183 = int_to_ptr.vmem [resolvable:$true] %s182
          %185 = dma.vmem_to_smem %s183, 16, [#allocation6], [#allocation5]
        $region20: #{tpu_custom_call.1} parent=11 // pred_fallthru
          _
        // Predicated region
        $region21: #{tpu_custom_call.1} parent=11 // pred_check
          %p186 = pneg %p96
        $region22: #{tpu_custom_call.1} parent=11 // pred_check_branch
          %188 = sbr.rel (%p186) target = $region24
        $region23: #{tpu_custom_call.1} parent=11 // pred_region
          %s190 = ssub.s32 16, 16
          %191 = vsyncadd [#allocation8], %s190
          %s193 = sshll.u32 %s2, 4
          %s194 = int_to_ptr.vmem [resolvable:$true] %s193
          %196 = dma.vmem_to_smem %s194, 16, [#allocation7], [#allocation8]
        $region24: #{tpu_custom_call.1} parent=11 // pred_fallthru
          _
        // Predicated region
        $region25: #{tpu_custom_call.1} parent=11 // pred_check
          %p197 = pneg %p117
        $region26: #{tpu_custom_call.1} parent=11 // pred_check_branch
          %199 = sbr.rel (%p197) target = $region28
        $region27: #{tpu_custom_call.1} parent=11 // pred_region
          %s201 = ssub.s32 16, 16
          %202 = vsyncadd [#allocation8], %s201
          %s204 = sshll.u32 %s3, 4
          %s205 = int_to_ptr.vmem [resolvable:$true] %s204
          %207 = dma.vmem_to_smem %s205, 16, [#allocation9], [#allocation8]
        $region28: #{tpu_custom_call.1} parent=11 // pred_fallthru
          _
      $region12: #{tpu_custom_call.1} parent=5 // pred_fallthru
        _
      %p208 = scmp.lt.s32.totalorder %s16, 4
      // Predicated region
      $region29: #{tpu_custom_call.1} parent=5 // pred_check
        %p209 = pneg %p208
      $region30: #{tpu_custom_call.1} parent=5 // pred_check_branch
        %211 = sbr.rel (%p209) target = $region32
      $region31: #{tpu_custom_call.1} parent=5 // pred_region
        _
      $region32: #{tpu_custom_call.1} parent=5 // pred_fallthru
        _
      %p212 = scmp.le.s32.totalorder 1, %s16
      %p213 = scmp.lt.s32.totalorder %s16, 5
      %p214 = pnand %p212, %p213
      %p215 = pneg %p214
      // Predicated region
      $region33: #{tpu_custom_call.1} parent=5 // pred_check
        _
      $region34: #{tpu_custom_call.1} parent=5 // pred_check_branch
        %217 = sbr.rel (%p214) target = $region36
      $region35: #{tpu_custom_call.1} parent=5 // pred_region
        %s218 = ssub.s32 %s16, 1
        // Predicated region
        $region37: #{tpu_custom_call.1} parent=35 // pred_check
          %p219 = pneg %p54
        $region38: #{tpu_custom_call.1} parent=35 // pred_check_branch
          %221 = sbr.rel (%p219) target = $region40
        $region39: #{tpu_custom_call.1} parent=35 // pred_region
          %222 = dma.done [#allocation3], 1024
        $region40: #{tpu_custom_call.1} parent=35 // pred_fallthru
          _
        // Predicated region
        $region41: #{tpu_custom_call.1} parent=35 // pred_check
          %p223 = pneg %p75
        $region42: #{tpu_custom_call.1} parent=35 // pred_check_branch
          %225 = sbr.rel (%p223) target = $region44
        $region43: #{tpu_custom_call.1} parent=35 // pred_region
          %226 = dma.done [#allocation5], 16
        $region44: #{tpu_custom_call.1} parent=35 // pred_fallthru
          _
        // Predicated region
        $region45: #{tpu_custom_call.1} parent=35 // pred_check
          %p227 = pneg %p96
        $region46: #{tpu_custom_call.1} parent=35 // pred_check_branch
          %229 = sbr.rel (%p227) target = $region48
        $region47: #{tpu_custom_call.1} parent=35 // pred_region
          %230 = dma.done [#allocation8], 16
        $region48: #{tpu_custom_call.1} parent=35 // pred_fallthru
          _
        // Predicated region
        $region49: #{tpu_custom_call.1} parent=35 // pred_check
          %p231 = pneg %p117
        $region50: #{tpu_custom_call.1} parent=35 // pred_check_branch
          %233 = sbr.rel (%p231) target = $region52
        $region51: #{tpu_custom_call.1} parent=35 // pred_region
          %234 = dma.done [#allocation8], 16
        $region52: #{tpu_custom_call.1} parent=35 // pred_fallthru
          _
        %235 = sfence
        %p236 = pneg %p54
        %p237 = pneg %p51
        %p238 = pneg %p75
        %p239 = pneg %p72
        %p240 = pneg %p96
        %p241 = pneg %p93
        %p242 = pneg %p117
        %p243 = pneg %p114
        %p244 = pneg %p145
        %p245 = pneg %p142
        %s246 = sand.u32 %s132, 1
        %s247 = scalar_lea.sflag [#allocation4], %s246
        %s248 = sand.u32 %s132, 1
        %s249 = smul.addr %s248, 16
        %s250 = scalar_lea.vmem [#allocation10], %s249
        %s251 = smul.u32 2, %s26
        %v252 = vld [vmem:[#allocation2] sm:$0xff]
        %s253 = scalar_lea.vmem [#allocation2], 8
        %v254 = vld [vmem:[%s253] sm:$0xff]
        %s255 = scalar_lea.vmem [#allocation2], 16
        %v256 = vld [vmem:[%s255] sm:$0xff]
        %s257 = scalar_lea.vmem [#allocation2], 24
        %v258 = vld [vmem:[%s257] sm:$0xff]
        %s259 = scalar_lea.vmem [#allocation2], 32
        %v260 = vld [vmem:[%s259] sm:$0xff]
        %s261 = scalar_lea.vmem [#allocation2], 40
        %v262 = vld [vmem:[%s261] sm:$0xff]
        %s263 = scalar_lea.vmem [#allocation2], 48
        %v264 = vld [vmem:[%s263] sm:$0xff]
        %s265 = scalar_lea.vmem [#allocation2], 56
        %v266 = vld [vmem:[%s265] sm:$0xff]
        %s267 = smul.u32 %s26, 4
        %s268 = smul.u32 %s26, 32
        %s269 = sld [smem:[#allocation6 + %s268]]
        %v270 = vstv %s269
        %v271 = vmul.f32 %v252, %v270
        %s272 = sadd.s32 %s268, 1
        %s273 = sld [smem:[#allocation6 + %s272]]
        %v274 = vstv %s273
        %v275 = vmul.f32 %v254, %v274
        %v276 = vadd.f32 %v271, %v275
        %s277 = sadd.s32 %s268, 2
        %s278 = sld [smem:[#allocation6 + %s277]]
        %v279 = vstv %s278
        %v280 = vmul.f32 %v256, %v279
        %v281 = vadd.f32 %v276, %v280
        %s282 = sadd.s32 %s268, 3
        %s283 = sld [smem:[#allocation6 + %s282]]
        %v284 = vstv %s283
        %v285 = vmul.f32 %v258, %v284
        %v286 = vadd.f32 %v281, %v285
        %s287 = sadd.s32 %s268, 4
        %s288 = sld [smem:[#allocation6 + %s287]]
        %v289 = vstv %s288
        %v290 = vmul.f32 %v260, %v289
        %v291 = vadd.f32 %v286, %v290
        %s292 = sadd.s32 %s268, 5
        %s293 = sld [smem:[#allocation6 + %s292]]
        %v294 = vstv %s293
        %v295 = vmul.f32 %v262, %v294
        %v296 = vadd.f32 %v291, %v295
        %s297 = sadd.s32 %s268, 6
        %s298 = sld [smem:[#allocation6 + %s297]]
        %v299 = vstv %s298
        %v300 = vmul.f32 %v264, %v299
        %v301 = vadd.f32 %v296, %v300
        %s302 = sadd.s32 %s268, 7
        %s303 = sld [smem:[#allocation6 + %s302]]
        %v304 = vstv %s303
        %v305 = vmul.f32 %v266, %v304
        %v306 = vadd.f32 %v301, %v305
        %s307 = sld [smem:[#allocation7 + %s267]]
        %v308 = vstv %s307
        %v309 = vadd.f32 %v306, %v308
        %s310 = sadd.s32 %s267, 1
        %s311 = smul.u32 %s310, 8
        %s312 = sld [smem:[#allocation6 + %s311]]
        %v313 = vstv %s312
        %v314 = vmul.f32 %v252, %v313
        %s315 = sadd.s32 %s311, 1
        %s316 = sld [smem:[#allocation6 + %s315]]
        %v317 = vstv %s316
        %v318 = vmul.f32 %v254, %v317
        %v319 = vadd.f32 %v314, %v318
        %s320 = sadd.s32 %s311, 2
        %s321 = sld [smem:[#allocation6 + %s320]]
        %v322 = vstv %s321
        %v323 = vmul.f32 %v256, %v322
        %v324 = vadd.f32 %v319, %v323
        %s325 = sadd.s32 %s311, 3
        %s326 = sld [smem:[#allocation6 + %s325]]
        %v327 = vstv %s326
        %v328 = vmul.f32 %v258, %v327
        %v329 = vadd.f32 %v324, %v328
        %s330 = sadd.s32 %s311, 4
        %s331 = sld [smem:[#allocation6 + %s330]]
        %v332 = vstv %s331
        %v333 = vmul.f32 %v260, %v332
        %v334 = vadd.f32 %v329, %v333
        %s335 = sadd.s32 %s311, 5
        %s336 = sld [smem:[#allocation6 + %s335]]
        %v337 = vstv %s336
        %v338 = vmul.f32 %v262, %v337
        %v339 = vadd.f32 %v334, %v338
        %s340 = sadd.s32 %s311, 6
        %s341 = sld [smem:[#allocation6 + %s340]]
        %v342 = vstv %s341
        %v343 = vmul.f32 %v264, %v342
        %v344 = vadd.f32 %v339, %v343
        %s345 = sadd.s32 %s311, 7
        %s346 = sld [smem:[#allocation6 + %s345]]
        %v347 = vstv %s346
        %v348 = vmul.f32 %v266, %v347
        %v349 = vadd.f32 %v344, %v348
        %s350 = sld [smem:[#allocation7 + %s310]]
        %v351 = vstv %s350
        %v352 = vadd.f32 %v349, %v351
        %s353 = sadd.s32 %s267, 2
        %s354 = smul.u32 %s353, 8
        %s355 = sld [smem:[#allocation6 + %s354]]
        %v356 = vstv %s355
        %v357 = vmul.f32 %v252, %v356
        %s358 = sadd.s32 %s354, 1
        %s359 = sld [smem:[#allocation6 + %s358]]
        %v360 = vstv %s359
        %v361 = vmul.f32 %v254, %v360
        %v362 = vadd.f32 %v357, %v361
        %s363 = sadd.s32 %s354, 2
        %s364 = sld [smem:[#allocation6 + %s363]]
        %v365 = vstv %s364
        %v366 = vmul.f32 %v256, %v365
        %v367 = vadd.f32 %v362, %v366
        %s368 = sadd.s32 %s354, 3
        %s369 = sld [smem:[#allocation6 + %s368]]
        %v370 = vstv %s369
        %v371 = vmul.f32 %v258, %v370
        %v372 = vadd.f32 %v367, %v371
        %s373 = sadd.s32 %s354, 4
        %s374 = sld [smem:[#allocation6 + %s373]]
        %v375 = vstv %s374
        %v376 = vmul.f32 %v260, %v375
        %v377 = vadd.f32 %v372, %v376
        %s378 = sadd.s32 %s354, 5
        %s379 = sld [smem:[#allocation6 + %s378]]
        %v380 = vstv %s379
        %v381 = vmul.f32 %v262, %v380
        %v382 = vadd.f32 %v377, %v381
        %s383 = sadd.s32 %s354, 6
        %s384 = sld [smem:[#allocation6 + %s383]]
        %v385 = vstv %s384
        %v386 = vmul.f32 %v264, %v385
        %v387 = vadd.f32 %v382, %v386
        %s388 = sadd.s32 %s354, 7
        %s389 = sld [smem:[#allocation6 + %s388]]
        %v390 = vstv %s389
        %v391 = vmul.f32 %v266, %v390
        %v392 = vadd.f32 %v387, %v391
        %s393 = sld [smem:[#allocation7 + %s353]]
        %v394 = vstv %s393
        %v395 = vadd.f32 %v392, %v394
        %s396 = sadd.s32 %s267, 3
        %s397 = smul.u32 %s396, 8
        %s398 = sld [smem:[#allocation6 + %s397]]
        %v399 = vstv %s398
        %v400 = vmul.f32 %v252, %v399
        %s401 = sadd.s32 %s397, 1
        %s402 = sld [smem:[#allocation6 + %s401]]
        %v403 = vstv %s402
        %v404 = vmul.f32 %v254, %v403
        %v405 = vadd.f32 %v400, %v404
        %s406 = sadd.s32 %s397, 2
        %s407 = sld [smem:[#allocation6 + %s406]]
        %v408 = vstv %s407
        %v409 = vmul.f32 %v256, %v408
        %v410 = vadd.f32 %v405, %v409
        %s411 = sadd.s32 %s397, 3
        %s412 = sld [smem:[#allocation6 + %s411]]
        %v413 = vstv %s412
        %v414 = vmul.f32 %v258, %v413
        %v415 = vadd.f32 %v410, %v414
        %s416 = sadd.s32 %s397, 4
        %s417 = sld [smem:[#allocation6 + %s416]]
        %v418 = vstv %s417
        %v419 = vmul.f32 %v260, %v418
        %v420 = vadd.f32 %v415, %v419
        %s421 = sadd.s32 %s397, 5
        %s422 = sld [smem:[#allocation6 + %s421]]
        %v423 = vstv %s422
        %v424 = vmul.f32 %v262, %v423
        %v425 = vadd.f32 %v420, %v424
        %s426 = sadd.s32 %s397, 6
        %s427 = sld [smem:[#allocation6 + %s426]]
        %v428 = vstv %s427
        %v429 = vmul.f32 %v264, %v428
        %v430 = vadd.f32 %v425, %v429
        %s431 = sadd.s32 %s397, 7
        %s432 = sld [smem:[#allocation6 + %s431]]
        %v433 = vstv %s432
        %v434 = vmul.f32 %v266, %v433
        %v435 = vadd.f32 %v430, %v434
        %s436 = sld [smem:[#allocation7 + %s396]]
        %v437 = vstv %s436
        %v438 = vadd.f32 %v435, %v437
        %v440 = vcombine.high %v309, %v309
        %v442 = vunpack.c.l.s4 1966171168
        %v443 = vunpack.c.0.s8 %v442
        %v444 = vlaneseq
        %v445 = vshrl.u32 %v444, 7
        %v446 = vsub.s32 %v443, %v445
        %v447 = vrot.slane %v309, %v446
        %v449 = vunpack.c.l.s4 1966171168
        %v450 = vunpack.c.0.s8 %v449
        %v451 = vlaneseq
        %v452 = vshrl.u32 %v451, 7
        %v453 = vsub.s32 %v450, %v452
        %v454 = vrot.slane %v440, %v453
        %v455 = vcombine.high %v447, %v447
        %v456 = vcombine.high %v454, %v454
        %v458 = vunpack.c.l.s4 1966171168
        %v459 = vunpack.c.0.s8 %v458
        %v460 = vlaneseq
        %v461 = vshrl.u32 %v460, 7
        %v462 = vsub.s32 %v459, %v461
        %v463 = vrot.slane %v447, %v462
        %v465 = vunpack.c.l.s4 1966171168
        %v466 = vunpack.c.0.s8 %v465
        %v467 = vlaneseq
        %v468 = vshrl.u32 %v467, 7
        %v469 = vsub.s32 %v466, %v468
        %v470 = vrot.slane %v454, %v469
        %v472 = vunpack.c.l.s4 1966171168
        %v473 = vunpack.c.0.s8 %v472
        %v474 = vlaneseq
        %v475 = vshrl.u32 %v474, 7
        %v476 = vsub.s32 %v473, %v475
        %v477 = vrot.slane %v455, %v476
        %v479 = vunpack.c.l.s4 1966171168
        %v480 = vunpack.c.0.s8 %v479
        %v481 = vlaneseq
        %v482 = vshrl.u32 %v481, 7
        %v483 = vsub.s32 %v480, %v482
        %v484 = vrot.slane %v456, %v483
        %v485 = vcombine.high %v463, %v463
        %v486 = vcombine.high %v470, %v470
        %v487 = vcombine.high %v477, %v477
        %v488 = vcombine.high %v484, %v484
        %v489 = vlaneseq
        %v490 = vshrl.u32 %v489, 7
        %v491 = vsub.s32 0, %v490
        %v492 = vrot.slane %v463, %v491
        %v493 = vlaneseq
        %v494 = vshrl.u32 %v493, 7
        %v495 = vsub.s32 0, %v494
        %v496 = vrot.slane %v477, %v495
        %v497 = vlaneseq
        %v498 = vshrl.u32 %v497, 7
        %v499 = vsub.s32 0, %v498
        %v500 = vrot.slane %v485, %v499
        %v501 = vlaneseq
        %v502 = vshrl.u32 %v501, 7
        %v503 = vsub.s32 0, %v502
        %v504 = vrot.slane %v487, %v503
        %v505 = vlaneseq
        %v506 = vshrl.u32 %v505, 7
        %v507 = vsub.s32 0, %v506
        %v508 = vrot.slane %v470, %v507
        %v509 = vlaneseq
        %v510 = vshrl.u32 %v509, 7
        %v511 = vsub.s32 0, %v510
        %v512 = vrot.slane %v484, %v511
        %v513 = vlaneseq
        %v514 = vshrl.u32 %v513, 7
        %v515 = vsub.s32 0, %v514
        %v516 = vrot.slane %v486, %v515
        %v517 = vlaneseq
        %v518 = vshrl.u32 %v517, 7
        %v519 = vsub.s32 0, %v518
        %v520 = vrot.slane %v488, %v519
        %v529 = vmul.f32 %v492, %v352
        %v530 = vmul.f32 %v496, %v352
        %v531 = vmul.f32 %v500, %v352
        %v532 = vmul.f32 %v504, %v352
        %v533 = vmul.f32 %v508, %v352
        %v534 = vmul.f32 %v512, %v352
        %v535 = vmul.f32 %v516, %v352
        %v536 = vmul.f32 %v520, %v352
        %v537 = vrot.slane %v529, 4
        %v538 = vmax.f32 %v529, %v537
        %v539 = vrot.slane %v538, 2
        %v540 = vmax.f32 %v538, %v539
        %v541 = vrot.slane %v540, 1
        %v542 = vmax.f32 %v540, %v541
        %v543 = vrot.slane %v530, 4
        %v544 = vmax.f32 %v530, %v543
        %v545 = vrot.slane %v544, 2
        %v546 = vmax.f32 %v544, %v545
        %v547 = vrot.slane %v546, 1
        %v548 = vmax.f32 %v546, %v547
        %v549 = vrot.slane %v531, 4
        %v550 = vmax.f32 %v531, %v549
        %v551 = vrot.slane %v550, 2
        %v552 = vmax.f32 %v550, %v551
        %v553 = vrot.slane %v552, 1
        %v554 = vmax.f32 %v552, %v553
        %v555 = vrot.slane %v532, 4
        %v556 = vmax.f32 %v532, %v555
        %v557 = vrot.slane %v556, 2
        %v558 = vmax.f32 %v556, %v557
        %v559 = vrot.slane %v558, 1
        %v560 = vmax.f32 %v558, %v559
        %v561 = vrot.slane %v533, 4
        %v562 = vmax.f32 %v533, %v561
        %v563 = vrot.slane %v562, 2
        %v564 = vmax.f32 %v562, %v563
        %v565 = vrot.slane %v564, 1
        %v566 = vmax.f32 %v564, %v565
        %v567 = vrot.slane %v534, 4
        %v568 = vmax.f32 %v534, %v567
        %v569 = vrot.slane %v568, 2
        %v570 = vmax.f32 %v568, %v569
        %v571 = vrot.slane %v570, 1
        %v572 = vmax.f32 %v570, %v571
        %v573 = vrot.slane %v535, 4
        %v574 = vmax.f32 %v535, %v573
        %v575 = vrot.slane %v574, 2
        %v576 = vmax.f32 %v574, %v575
        %v577 = vrot.slane %v576, 1
        %v578 = vmax.f32 %v576, %v577
        %v579 = vrot.slane %v536, 4
        %v580 = vmax.f32 %v536, %v579
        %v581 = vrot.slane %v580, 2
        %v582 = vmax.f32 %v580, %v581
        %v583 = vrot.slane %v582, 1
        %v584 = vmax.f32 %v582, %v583
        %v585 = vsub.f32 %v529, %v542
        %v586 = vsub.f32 %v530, %v548
        %v587 = vsub.f32 %v531, %v554
        %v588 = vsub.f32 %v532, %v560
        %v589 = vsub.f32 %v533, %v566
        %v590 = vsub.f32 %v534, %v572
        %v591 = vsub.f32 %v535, %v578
        %v592 = vsub.f32 %v536, %v584
        %v593 = vmul.f32 %v585, 1.442695
        %v594 = vpow.pop %v593
        %v595 = vmul.f32 %v586, 1.442695
        %v596 = vpow.pop %v595
        %v597 = vmul.f32 %v587, 1.442695
        %v598 = vpow.pop %v597
        %v599 = vmul.f32 %v588, 1.442695
        %v600 = vpow.pop %v599
        %v601 = vmul.f32 %v589, 1.442695
        %v602 = vpow.pop %v601
        %v603 = vmul.f32 %v590, 1.442695
        %v604 = vpow.pop %v603
        %v605 = vmul.f32 %v591, 1.442695
        %v606 = vpow.pop %v605
        %v607 = vmul.f32 %v592, 1.442695
        %v608 = vpow.pop %v607
        %v609 = vrot.slane %v594, 4
        %v610 = vadd.f32 %v594, %v609
        %v611 = vrot.slane %v610, 2
        %v612 = vadd.f32 %v610, %v611
        %v613 = vrot.slane %v612, 1
        %v614 = vadd.f32 %v612, %v613
        %v615 = vrot.slane %v596, 4
        %v616 = vadd.f32 %v596, %v615
        %v617 = vrot.slane %v616, 2
        %v618 = vadd.f32 %v616, %v617
        %v619 = vrot.slane %v618, 1
        %v620 = vadd.f32 %v618, %v619
        %v621 = vrot.slane %v598, 4
        %v622 = vadd.f32 %v598, %v621
        %v623 = vrot.slane %v622, 2
        %v624 = vadd.f32 %v622, %v623
        %v625 = vrot.slane %v624, 1
        %v626 = vadd.f32 %v624, %v625
        %v627 = vrot.slane %v600, 4
        %v628 = vadd.f32 %v600, %v627
        %v629 = vrot.slane %v628, 2
        %v630 = vadd.f32 %v628, %v629
        %v631 = vrot.slane %v630, 1
        %v632 = vadd.f32 %v630, %v631
        %v633 = vrot.slane %v602, 4
        %v634 = vadd.f32 %v602, %v633
        %v635 = vrot.slane %v634, 2
        %v636 = vadd.f32 %v634, %v635
        %v637 = vrot.slane %v636, 1
        %v638 = vadd.f32 %v636, %v637
        %v639 = vrot.slane %v604, 4
        %v640 = vadd.f32 %v604, %v639
        %v641 = vrot.slane %v640, 2
        %v642 = vadd.f32 %v640, %v641
        %v643 = vrot.slane %v642, 1
        %v644 = vadd.f32 %v642, %v643
        %v645 = vrot.slane %v606, 4
        %v646 = vadd.f32 %v606, %v645
        %v647 = vrot.slane %v646, 2
        %v648 = vadd.f32 %v646, %v647
        %v649 = vrot.slane %v648, 1
        %v650 = vadd.f32 %v648, %v649
        %v651 = vrot.slane %v608, 4
        %v652 = vadd.f32 %v608, %v651
        %v653 = vrot.slane %v652, 2
        %v654 = vadd.f32 %v652, %v653
        %v655 = vrot.slane %v654, 1
        %v656 = vadd.f32 %v654, %v655
        %v657 = vrcp.pop %v614
        %v658 = vmul.f32 1.0, %v657
        %v659 = vrcp.pop %v620
        %v660 = vmul.f32 1.0, %v659
        %v661 = vrcp.pop %v626
        %v662 = vmul.f32 1.0, %v661
        %v663 = vrcp.pop %v632
        %v664 = vmul.f32 1.0, %v663
        %v665 = vrcp.pop %v638
        %v666 = vmul.f32 1.0, %v665
        %v667 = vrcp.pop %v644
        %v668 = vmul.f32 1.0, %v667
        %v669 = vrcp.pop %v650
        %v670 = vmul.f32 1.0, %v669
        %v671 = vrcp.pop %v656
        %v672 = vmul.f32 1.0, %v671
        %v673 = vmul.f32 %v594, %v395
        %v674 = vmul.f32 %v596, %v395
        %v675 = vmul.f32 %v598, %v395
        %v676 = vmul.f32 %v600, %v395
        %v677 = vmul.f32 %v602, %v395
        %v678 = vmul.f32 %v604, %v395
        %v679 = vmul.f32 %v606, %v395
        %v680 = vmul.f32 %v608, %v395
        %v681 = vrot.slane %v673, 4
        %v682 = vadd.f32 %v673, %v681
        %v683 = vrot.slane %v682, 2
        %v684 = vadd.f32 %v682, %v683
        %v685 = vrot.slane %v684, 1
        %v686 = vadd.f32 %v684, %v685
        %v687 = vrot.slane %v674, 4
        %v688 = vadd.f32 %v674, %v687
        %v689 = vrot.slane %v688, 2
        %v690 = vadd.f32 %v688, %v689
        %v691 = vrot.slane %v690, 1
        %v692 = vadd.f32 %v690, %v691
        %v693 = vrot.slane %v675, 4
        %v694 = vadd.f32 %v675, %v693
        %v695 = vrot.slane %v694, 2
        %v696 = vadd.f32 %v694, %v695
        %v697 = vrot.slane %v696, 1
        %v698 = vadd.f32 %v696, %v697
        %v699 = vrot.slane %v676, 4
        %v700 = vadd.f32 %v676, %v699
        %v701 = vrot.slane %v700, 2
        %v702 = vadd.f32 %v700, %v701
        %v703 = vrot.slane %v702, 1
        %v704 = vadd.f32 %v702, %v703
        %v705 = vrot.slane %v677, 4
        %v706 = vadd.f32 %v677, %v705
        %v707 = vrot.slane %v706, 2
        %v708 = vadd.f32 %v706, %v707
        %v709 = vrot.slane %v708, 1
        %v710 = vadd.f32 %v708, %v709
        %v711 = vrot.slane %v678, 4
        %v712 = vadd.f32 %v678, %v711
        %v713 = vrot.slane %v712, 2
        %v714 = vadd.f32 %v712, %v713
        %v715 = vrot.slane %v714, 1
        %v716 = vadd.f32 %v714, %v715
        %v717 = vrot.slane %v679, 4
        %v718 = vadd.f32 %v679, %v717
        %v719 = vrot.slane %v718, 2
        %v720 = vadd.f32 %v718, %v719
        %v721 = vrot.slane %v720, 1
        %v722 = vadd.f32 %v720, %v721
        %v723 = vrot.slane %v680, 4
        %v724 = vadd.f32 %v680, %v723
        %v725 = vrot.slane %v724, 2
        %v726 = vadd.f32 %v724, %v725
        %v727 = vrot.slane %v726, 1
        %v728 = vadd.f32 %v726, %v727
        %s729 = smul.u32 %s26, 2
        %v730 = vmul.f32 %v686, %v658
        %v731 = vmul.f32 %v692, %v660
        %v732 = vmul.f32 %v698, %v662
        %v733 = vmul.f32 %v704, %v664
        %v734 = vmul.f32 %v710, %v666
        %v735 = vmul.f32 %v716, %v668
        %v736 = vmul.f32 %v722, %v670
        %v737 = vmul.f32 %v728, %v672
        %s738 = sld [smem:[#allocation9 + %s729]]
        %v739 = vstv %s738
        %v740 = vadd.f32 %v730, %v739
        %v741 = vadd.f32 %v731, %v739
        %v742 = vadd.f32 %v732, %v739
        %v743 = vadd.f32 %v733, %v739
        %v744 = vadd.f32 %v734, %v739
        %v745 = vadd.f32 %v735, %v739
        %v746 = vadd.f32 %v736, %v739
        %v747 = vadd.f32 %v737, %v739
        %vm756 = vcmask 1041409
        %v757 = vsel %vm756, %v741, %v740
        %vm758 = vcmask 1042434
        %v759 = vsel %vm758, %v742, %v757
        %vm760 = vcmask 1043459
        %v761 = vsel %vm760, %v743, %v759
        %vm762 = vcmask 1044484
        %v763 = vsel %vm762, %v744, %v761
        %vm764 = vcmask 1045509
        %v765 = vsel %vm764, %v745, %v763
        %vm766 = vcmask 1046534
        %v767 = vsel %vm766, %v746, %v765
        %vm768 = vcmask 1047559
        %v769 = vsel %vm768, %v747, %v767
        %771 = vst [vmem:[%s250] sm:$0xff] %v769
        %v772 = vmul.f32 %v594, %v438
        %v773 = vmul.f32 %v596, %v438
        %v774 = vmul.f32 %v598, %v438
        %v775 = vmul.f32 %v600, %v438
        %v776 = vmul.f32 %v602, %v438
        %v777 = vmul.f32 %v604, %v438
        %v778 = vmul.f32 %v606, %v438
        %v779 = vmul.f32 %v608, %v438
        %v780 = vrot.slane %v772, 4
        %v781 = vadd.f32 %v772, %v780
        %v782 = vrot.slane %v781, 2
        %v783 = vadd.f32 %v781, %v782
        %v784 = vrot.slane %v783, 1
        %v785 = vadd.f32 %v783, %v784
        %v786 = vrot.slane %v773, 4
        %v787 = vadd.f32 %v773, %v786
        %v788 = vrot.slane %v787, 2
        %v789 = vadd.f32 %v787, %v788
        %v790 = vrot.slane %v789, 1
        %v791 = vadd.f32 %v789, %v790
        %v792 = vrot.slane %v774, 4
        %v793 = vadd.f32 %v774, %v792
        %v794 = vrot.slane %v793, 2
        %v795 = vadd.f32 %v793, %v794
        %v796 = vrot.slane %v795, 1
        %v797 = vadd.f32 %v795, %v796
        %v798 = vrot.slane %v775, 4
        %v799 = vadd.f32 %v775, %v798
        %v800 = vrot.slane %v799, 2
        %v801 = vadd.f32 %v799, %v800
        %v802 = vrot.slane %v801, 1
        %v803 = vadd.f32 %v801, %v802
        %v804 = vrot.slane %v776, 4
        %v805 = vadd.f32 %v776, %v804
        %v806 = vrot.slane %v805, 2
        %v807 = vadd.f32 %v805, %v806
        %v808 = vrot.slane %v807, 1
        %v809 = vadd.f32 %v807, %v808
        %v810 = vrot.slane %v777, 4
        %v811 = vadd.f32 %v777, %v810
        %v812 = vrot.slane %v811, 2
        %v813 = vadd.f32 %v811, %v812
        %v814 = vrot.slane %v813, 1
        %v815 = vadd.f32 %v813, %v814
        %v816 = vrot.slane %v778, 4
        %v817 = vadd.f32 %v778, %v816
        %v818 = vrot.slane %v817, 2
        %v819 = vadd.f32 %v817, %v818
        %v820 = vrot.slane %v819, 1
        %v821 = vadd.f32 %v819, %v820
        %v822 = vrot.slane %v779, 4
        %v823 = vadd.f32 %v779, %v822
        %v824 = vrot.slane %v823, 2
        %v825 = vadd.f32 %v823, %v824
        %v826 = vrot.slane %v825, 1
        %v827 = vadd.f32 %v825, %v826
        %s828 = sadd.s32 %s729, 1
        %v829 = vmul.f32 %v785, %v658
        %v830 = vmul.f32 %v791, %v660
        %v831 = vmul.f32 %v797, %v662
        %v832 = vmul.f32 %v803, %v664
        %v833 = vmul.f32 %v809, %v666
        %v834 = vmul.f32 %v815, %v668
        %v835 = vmul.f32 %v821, %v670
        %v836 = vmul.f32 %v827, %v672
        %s837 = sld [smem:[#allocation9 + %s828]]
        %v838 = vstv %s837
        %v839 = vadd.f32 %v829, %v838
        %v840 = vadd.f32 %v830, %v838
        %v841 = vadd.f32 %v831, %v838
        %v842 = vadd.f32 %v832, %v838
        %v843 = vadd.f32 %v833, %v838
        %v844 = vadd.f32 %v834, %v838
        %v845 = vadd.f32 %v835, %v838
        %v846 = vadd.f32 %v836, %v838
        %v855 = vsel %vm756, %v840, %v839
        %v856 = vsel %vm758, %v841, %v855
        %v857 = vsel %vm760, %v842, %v856
        %v858 = vsel %vm762, %v843, %v857
        %v859 = vsel %vm764, %v844, %v858
        %v860 = vsel %vm766, %v845, %v859
        %v861 = vsel %vm768, %v846, %v860
        %s863 = scalar_lea.vmem %s250, 8 [#allocation10]
        %864 = vst [vmem:[%s863] sm:$0xff] %v861
        %s865 = sand.u32 %s132, 1
        %s866 = scalar_lea.sflag [#allocation4], %s865
        %s867 = sand.u32 %s132, 1
        %s868 = smul.addr %s867, 16
        %s869 = scalar_lea.vmem [#allocation10], %s868
        // Predicated region
        $region53: #{tpu_custom_call.1} parent=35 // pred_check
          %p870 = pneg %p142
        $region54: #{tpu_custom_call.1} parent=35 // pred_check_branch
          %872 = sbr.rel (%p870) target = $region56
        $region55: #{tpu_custom_call.1} parent=35 // pred_region
          %s873 = smul.u32 2, %s26
          %s875 = ssub.s32 256, 256
          %876 = vsyncadd %s866, %s875
          %s877 = sadd.s32 %s25, %s873
          %s878 = smul.addr %s877, 128
          %s879 = scalar_lea.hbm %s4, %s878
          %s880 = sshll.u32 %s869, 4
          %s881 = int_to_ptr.vmem [resolvable:$true] %s880
          %886 = dma.vmem_to_hbm [thread:$0]  %s881, 256, %s879, %s866, 128, 128, 8
        $region56: #{tpu_custom_call.1} parent=35 // pred_fallthru
          _
      $region36: #{tpu_custom_call.1} parent=5 // pred_fallthru
        _
      %p887 = scmp.le.s32.totalorder 2, %s16
      // Predicated region
      $region57: #{tpu_custom_call.1} parent=5 // pred_check
        %p888 = pneg %p887
      $region58: #{tpu_custom_call.1} parent=5 // pred_check_branch
        %890 = sbr.rel (%p888) target = $region60
      $region59: #{tpu_custom_call.1} parent=5 // pred_region
        %s891 = ssub.s32 %s16, 2
        // Predicated region
        $region61: #{tpu_custom_call.1} parent=59 // pred_check
          %p892 = pneg %p148
        $region62: #{tpu_custom_call.1} parent=59 // pred_check_branch
          %894 = sbr.rel (%p892) target = $region64
        $region63: #{tpu_custom_call.1} parent=59 // pred_region
          %s895 = sand.u32 %s133, 1
          %s896 = scalar_lea.sflag [#allocation4], %s895
          %s897 = sand.u32 %s133, 1
          %s898 = smul.addr %s897, 16
          %s899 = scalar_lea.vmem [#allocation10], %s898
          %900 = dma.done %s896, 256
        $region64: #{tpu_custom_call.1} parent=59 // pred_fallthru
          _
      $region60: #{tpu_custom_call.1} parent=5 // pred_fallthru
        _
    $region6: #{tpu_custom_call.1} parent=1 // loop_footer
      %s20 = sadd.s32 1, %s16
    $region7: #{tpu_custom_call.1} parent=1 // loop_footer_branch
      %15 = sbr.rel target = $region3
    $region8: #{tpu_custom_call.1} parent=1 // loop_exit
      _
    %901 = vsyncpa [#allocation3], 1
    %s902 = scalar_lea.sflag [#allocation3], 1
    %903 = vsyncpa %s902, 1
    %904 = vsyncpa [#allocation4], 1
    %s905 = scalar_lea.sflag [#allocation4], 1
    %906 = vsyncpa %s905, 1
    %907 = vsyncpa [#allocation5], 1
    %s908 = scalar_lea.sflag [#allocation5], 1
    %909 = vsyncpa %s908, 1
    %910 = vsyncpa [#allocation8], 1

</llo_original>
